<compile_context>
chip_gen: v6e
topology: v6e:2x2x1
jax: 0.10.0
libtpu: 0.0.40
codegen_flags: <defaults>
</compile_context>

<pallas_src>
import functools

import jax
import jax.numpy as jnp
from jax import lax
from jax.experimental import pallas as pl
from jax.experimental.pallas import tpu as pltpu


def _round_up(x, m):
    return (x + m - 1) // m * m


def _pick_row_tile(total_rows, row_bytes, max_block_bytes=1 << 20):
    """Row-tile size: multiple of 8, block <= ~1 MiB, <= padded row count."""
    by_vmem = max(8, (max_block_bytes // max(row_bytes, 1)) // 8 * 8)
    tm = min(_round_up(total_rows, 8), by_vmem, 2048)
    return max(tm, 8)


def _stage_and_node(row, n_node):
    # stage = row // n_node, node = row % n_node -- computed with compares,
    # multiply and subtract only (no vectorized integer division on the VPU).
    stage = (row >= n_node).astype(jnp.int32) + (row >= 2 * n_node).astype(jnp.int32)
    node = row - stage * n_node
    return stage, node


def _theta_select(theta_ref, stage):
    t0 = theta_ref[0, 0]
    t1 = theta_ref[0, 1]
    t2 = theta_ref[0, 2]
    return jnp.where(stage == 0, t0, jnp.where(stage == 1, t1, t2))


# ----------------------------------------------------------------------------
# p == 1 : fused lane-dense weighted abs-sum over the flattened (rows,128) view
# ----------------------------------------------------------------------------
def _l1_alpha_flat_kernel(theta_ref, x_ref, out_ref, *,
                          n_node, kp2_log2, k, n_rows, tm):
    i = pl.program_id(0)

    @pl.when(i == 0)
    def _init():
        out_ref[0, 0] = jnp.float32(0.0)

    x = x_ref[...].astype(jnp.float32)                       # (tm, 128)

    # Global flat element index inside the (n_rows, kp2)-padded array.
    base = i * (tm * 128)
    flat = (base
            + lax.broadcasted_iota(jnp.int32, (tm, 128), 0) * 128
            + lax.broadcasted_iota(jnp.int32, (tm, 128), 1))
    row = jnp.right_shift(flat, kp2_log2)                    # flat // kp2 (pow2)
    col = jnp.bitwise_and(flat, (1 << kp2_log2) - 1)         # flat %  kp2
    stage, node = _stage_and_node(row, n_node)
    keep = ((node >= 2) & (node < n_node - 2)
            & (row < n_rows) & (col < k))

    w = jnp.where(keep, _theta_select(theta_ref, stage), 0.0)
    xm = jnp.where(keep, x, 0.0)                             # mask data (inf/nan safe)

    out_ref[0, 0] += jnp.sum(w * jnp.abs(xm))                # single dense reduce


# ----------------------------------------------------------------------------
# p >= 2 : row-tiled per-row p-norm, masked before the reduction
# ----------------------------------------------------------------------------
def _l1_alpha_row_kernel(theta_ref, x_ref, out_ref, *, p, n_node, n_rows, tm):
    i = pl.program_id(0)

    @pl.when(i == 0)
    def _init():
        out_ref[0, 0] = jnp.float32(0.0)

    x = x_ref[...].astype(jnp.float32)                       # (tm, K)

    row = i * tm + lax.broadcasted_iota(jnp.int32, (tm, 1), 0)
    stage, node = _stage_and_node(row, n_node)
    keep = (node >= 2) & (node < n_node - 2) & (row < n_rows)  # (tm, 1)

    w = jnp.where(keep, _theta_select(theta_ref, stage), 0.0)  # (tm, 1)
    xm = jnp.where(keep, x, 0.0)                               # mask before norm

    if p == 1:
        out_ref[0, 0] += jnp.sum(w * jnp.abs(xm))
        return
    if p == 2:
        ss = jnp.sum(xm * xm, axis=1, keepdims=True)
        norm = jnp.sqrt(ss)
    else:
        ax = jnp.abs(xm)
        acc = ax
        for _ in range(int(p) - 1):        # small static int p: VALU multiplies
            acc = acc * ax
        s = jnp.sum(acc, axis=1, keepdims=True)
        s_safe = jnp.maximum(s, jnp.float32(1e-30))
        norm = jnp.where(s > 0, jnp.exp(jnp.log(s_safe) * (1.0 / p)), 0.0)

    out_ref[0, 0] += jnp.sum(w * norm)


# ----------------------------------------------------------------------------
# Wrapper
# ----------------------------------------------------------------------------
def l1loss_alpha(alpha, n_node, theta, p=1):
    """Pallas equivalent of L1loss_alpha(n_node, theta, p).forward(alpha)."""
    assert isinstance(p, int) and p >= 1, "p must be a static python int >= 1"
    n_rows = 3 * n_node
    assert alpha.ndim == 2 and alpha.shape[0] == n_rows
    k = alpha.shape[1]
    theta_arr = jnp.asarray(theta, jnp.float32).reshape(1, 3)   # 3 stages (SMEM)

    lanes = 128
    itemsize = jnp.dtype(alpha.dtype).itemsize

    if p == 1:
        # Lane-dense flat layout: pad K to the next power of two (cheap),
        # flatten, pad tail, reshape to (rows, 128).
        kp2 = max(1, pl.next_power_of_2(k))
        kp2_log2 = kp2.bit_length() - 1
        alpha2 = alpha if kp2 == k else jnp.pad(alpha, ((0, 0), (0, kp2 - k)))
        flat = alpha2.reshape(-1)
        n_elems = n_rows * kp2
        rows_needed = pl.cdiv(n_elems, lanes)
        tm = _pick_row_tile(rows_needed, lanes * itemsize)
        rows_p = _round_up(rows_needed, tm)
        pad = rows_p * lanes - n_elems
        if pad:
            flat = jnp.pad(flat, (0, pad))
        x = flat.reshape(rows_p, lanes)
        kernel = functools.partial(_l1_alpha_flat_kernel, n_node=n_node,
                                   kp2_log2=kp2_log2, k=k, n_rows=n_rows, tm=tm)
        block = (tm, lanes)
    else:
        tm = _pick_row_tile(n_rows, k * itemsize)
        rows_p = _round_up(n_rows, tm)
        x = alpha if rows_p == n_rows else jnp.pad(
            alpha, ((0, rows_p - n_rows), (0, 0)))
        kernel = functools.partial(_l1_alpha_row_kernel, p=p, n_node=n_node,
                                   n_rows=n_rows, tm=tm)
        block = (tm, k)               # K == full last dim (allowed block shape)

    grid = (rows_p // tm,)
    out = pl.pallas_call(
        kernel,
        out_shape=jax.ShapeDtypeStruct((1, 1), jnp.float32),
        grid=grid,
        in_specs=[
            pl.BlockSpec(memory_space=pltpu.MemorySpace.SMEM),   # theta (1,3)
            pl.BlockSpec(block, lambda i: (i, 0)),               # data row tiles
        ],
        out_specs=pl.BlockSpec(memory_space=pltpu.MemorySpace.SMEM),
        # Row axis is a reduction into a single scalar accumulator -> keep it
        # "arbitrary".  (Marking it parallel on v7x would need per-core
        # partial outputs summed in the wrapper.)
        compiler_params=pltpu.CompilerParams(
            dimension_semantics=("arbitrary",)),
    )(theta_arr, x)
    return out[0, 0]


if __name__ == "__main__":
    # Small, deterministic problem consistent with the module:
    # 3 stages, n_node nodes per stage, K candidate ops per node.
    n_node = 8
    K = 7
    theta = [1.0, 0.5, 0.25]

    key = jax.random.PRNGKey(0)
    alpha = jax.random.normal(key, (3 * n_node, K), dtype=jnp.float32)
    theta_arr = jnp.asarray(theta, jnp.float32)

    # --- p = 1 (hot path) ---
    loss1 = jax.block_until_ready(l1loss_alpha(alpha, n_node, theta, p=1))
    ref1 = jnp.float32(0.0)
    for s in range(3):
        block = alpha[s * n_node:(s + 1) * n_node][2:-2]        # al[2:-2]
        row_norms = jnp.sum(jnp.abs(block), axis=1)
        ref1 = ref1 + jnp.sum(theta_arr[s] * row_norms)
    assert jnp.allclose(loss1, ref1, rtol=1e-5, atol=1e-5), (float(loss1), float(ref1))

    # --- p = 2 (row-norm path) ---
    loss2 = jax.block_until_ready(l1loss_alpha(alpha, n_node, theta, p=2))
    ref2 = jnp.float32(0.0)
    for s in range(3):
        block = alpha[s * n_node:(s + 1) * n_node][2:-2]
        row_norms = jnp.sqrt(jnp.sum(block * block, axis=1))
        ref2 = ref2 + jnp.sum(theta_arr[s] * row_norms)
    assert jnp.allclose(loss2, ref2, rtol=1e-5, atol=1e-5), (float(loss2), float(ref2))

    print("KERNEL_OK")
</pallas_src>

<mosaic_0001>
module attributes {stable_mosaic.version = 11 : i64} {
  func.func @_l1_alpha_flat_kernel(%arg0: i32, %arg1: memref<1x3xf32, #tpu.memory_space<smem>>, %arg2: memref<8x128xf32, #tpu.memory_space<vmem>>, %arg3: memref<1x1xf32, #tpu.memory_space<smem>>) attributes {dimension_semantics = [#tpu.dimension_semantics<arbitrary>], iteration_bounds = array<i64: 1>, scalar_prefetch = 0 : i64, scratch_operands = 0 : i64, tpu.core_type = #tpu.core_type<tc>, window_params = [{transform_indices = @transform_0, window_bounds = array<i64: 1, 3>}, {transform_indices = @transform_1, window_bounds = array<i64: 8, 128>}, {transform_indices = @transform_2, window_bounds = array<i64: 1, 1>}]} {
    %c0_i32 = arith.constant 0 : i32
    %0 = arith.cmpi eq, %arg0, %c0_i32 : i32
    %1 = arith.extui %0 : i1 to i32
    %c0_i32_0 = arith.constant 0 : i32
    %2 = arith.cmpi ne, %1, %c0_i32_0 : i32
    scf.if %2 {
      %cst_15 = arith.constant 0.000000e+00 : f32
      %c0_16 = arith.constant 0 : index
      %c0_17 = arith.constant 0 : index
      %62 = memref.load %arg3[%c0_16, %c0_17] : memref<1x1xf32, #tpu.memory_space<smem>>
      memref.store %cst_15, %arg3[%c0_16, %c0_17] : memref<1x1xf32, #tpu.memory_space<smem>>
    } else {
    }
    %c0 = arith.constant 0 : index
    %c0_1 = arith.constant 0 : index
    %3 = vector.load %arg2[%c0, %c0_1] : memref<8x128xf32, #tpu.memory_space<vmem>>, vector<8x128xf32>
    %c1024_i32 = arith.constant 1024 : i32
    %4 = arith.muli %arg0, %c1024_i32 : i32
    %5 = tpu.iota {dimensions = array<i32: 0>} : vector<8x128xi32>
    %c128_i32 = arith.constant 128 : i32
    %6 = vector.broadcast %c128_i32 : i32 to vector<8x128xi32>
    %7 = arith.muli %5, %6 : vector<8x128xi32>
    %8 = vector.broadcast %4 : i32 to vector<8x128xi32>
    %9 = arith.addi %8, %7 : vector<8x128xi32>
    %10 = tpu.iota {dimensions = array<i32: 1>} : vector<8x128xi32>
    %11 = arith.addi %9, %10 : vector<8x128xi32>
    %c3_i32 = arith.constant 3 : i32
    %12 = vector.broadcast %c3_i32 : i32 to vector<8x128xi32>
    %13 = arith.shrsi %11, %12 : vector<8x128xi32>
    %c7_i32 = arith.constant 7 : i32
    %14 = vector.broadcast %c7_i32 : i32 to vector<8x128xi32>
    %15 = arith.andi %11, %14 : vector<8x128xi32>
    %c8_i32 = arith.constant 8 : i32
    %16 = vector.broadcast %c8_i32 : i32 to vector<8x128xi32>
    %17 = arith.cmpi sge, %13, %16 : vector<8x128xi32>
    %18 = arith.extui %17 : vector<8x128xi1> to vector<8x128xi32>
    %c16_i32 = arith.constant 16 : i32
    %19 = vector.broadcast %c16_i32 : i32 to vector<8x128xi32>
    %20 = arith.cmpi sge, %13, %19 : vector<8x128xi32>
    %21 = arith.extui %20 : vector<8x128xi1> to vector<8x128xi32>
    %22 = arith.addi %18, %21 : vector<8x128xi32>
    %c8_i32_2 = arith.constant 8 : i32
    %23 = vector.broadcast %c8_i32_2 : i32 to vector<8x128xi32>
    %24 = arith.muli %22, %23 : vector<8x128xi32>
    %25 = arith.subi %13, %24 : vector<8x128xi32>
    %c2_i32 = arith.constant 2 : i32
    %26 = vector.broadcast %c2_i32 : i32 to vector<8x128xi32>
    %27 = arith.cmpi sge, %25, %26 : vector<8x128xi32>
    %c6_i32 = arith.constant 6 : i32
    %28 = vector.broadcast %c6_i32 : i32 to vector<8x128xi32>
    %29 = arith.cmpi slt, %25, %28 : vector<8x128xi32>
    %30 = arith.andi %27, %29 : vector<8x128xi1>
    %c24_i32 = arith.constant 24 : i32
    %31 = vector.broadcast %c24_i32 : i32 to vector<8x128xi32>
    %32 = arith.cmpi slt, %13, %31 : vector<8x128xi32>
    %33 = arith.andi %30, %32 : vector<8x128xi1>
    %c7_i32_3 = arith.constant 7 : i32
    %34 = vector.broadcast %c7_i32_3 : i32 to vector<8x128xi32>
    %35 = arith.cmpi slt, %15, %34 : vector<8x128xi32>
    %36 = arith.andi %33, %35 : vector<8x128xi1>
    %c0_4 = arith.constant 0 : index
    %c0_5 = arith.constant 0 : index
    %37 = memref.load %arg1[%c0_4, %c0_5] : memref<1x3xf32, #tpu.memory_space<smem>>
    %c0_6 = arith.constant 0 : index
    %c1 = arith.constant 1 : index
    %38 = memref.load %arg1[%c0_6, %c1] : memref<1x3xf32, #tpu.memory_space<smem>>
    %c0_7 = arith.constant 0 : index
    %c2 = arith.constant 2 : index
    %39 = memref.load %arg1[%c0_7, %c2] : memref<1x3xf32, #tpu.memory_space<smem>>
    %c0_i32_8 = arith.constant 0 : i32
    %40 = vector.broadcast %c0_i32_8 : i32 to vector<8x128xi32>
    %41 = arith.cmpi eq, %22, %40 : vector<8x128xi32>
    %c1_i32 = arith.constant 1 : i32
    %42 = vector.broadcast %c1_i32 : i32 to vector<8x128xi32>
    %43 = arith.cmpi eq, %22, %42 : vector<8x128xi32>
    %44 = vector.broadcast %38 : f32 to vector<8x128xf32>
    %45 = vector.broadcast %39 : f32 to vector<8x128xf32>
    %46 = arith.select %43, %44, %45 : vector<8x128xi1>, vector<8x128xf32>
    %47 = vector.broadcast %37 : f32 to vector<8x128xf32>
    %48 = arith.select %41, %47, %46 : vector<8x128xi1>, vector<8x128xf32>
    %cst = arith.constant 0.000000e+00 : f32
    %49 = vector.broadcast %cst : f32 to vector<8x128xf32>
    %50 = arith.select %36, %48, %49 : vector<8x128xi1>, vector<8x128xf32>
    %cst_9 = arith.constant 0.000000e+00 : f32
    %51 = vector.broadcast %cst_9 : f32 to vector<8x128xf32>
    %52 = arith.select %36, %3, %51 : vector<8x128xi1>, vector<8x128xf32>
    %c0_10 = arith.constant 0 : index
    %c0_11 = arith.constant 0 : index
    %53 = memref.load %arg3[%c0_10, %c0_11] : memref<1x1xf32, #tpu.memory_space<smem>>
    %54 = math.absf %52 : vector<8x128xf32>
    %55 = arith.mulf %50, %54 : vector<8x128xf32>
    %56 = vector.shape_cast %55 : vector<8x128xf32> to vector<1x8x128xf32>
    %cst_12 = arith.constant dense<0.000000e+00> : vector<1xf32>
    %57 = vector.multi_reduction <add>, %56, %cst_12 [1, 2] : vector<1x8x128xf32> to vector<1xf32>
    %58 = vector.shape_cast %57 : vector<1xf32> to vector<1x1x1xf32>
    %59 = vector.extract %58[0, 0, 0] : f32 from vector<1x1x1xf32>
    %60 = arith.addf %53, %59 : f32
    %c0_13 = arith.constant 0 : index
    %c0_14 = arith.constant 0 : index
    %61 = memref.load %arg3[%c0_13, %c0_14] : memref<1x1xf32, #tpu.memory_space<smem>>
    memref.store %60, %arg3[%c0_13, %c0_14] : memref<1x1xf32, #tpu.memory_space<smem>>
    return
  }
  func.func @transform_0(%arg0: i32) -> (i32, i32) {
    %c0_i32 = arith.constant 0 : i32
    %c0_i32_0 = arith.constant 0 : i32
    %c0_i32_1 = arith.constant 0 : i32
    return %c0_i32, %c0_i32_0 : i32, i32
  }
  func.func @transform_1(%arg0: i32) -> (i32, i32) {
    %c0_i32 = arith.constant 0 : i32
    %c0_i32_0 = arith.constant 0 : i32
    return %arg0, %c0_i32 : i32, i32
  }
  func.func @transform_2(%arg0: i32) -> (i32, i32) {
    %c0_i32 = arith.constant 0 : i32
    %c0_i32_0 = arith.constant 0 : i32
    %c0_i32_1 = arith.constant 0 : i32
    return %c0_i32, %c0_i32_0 : i32, i32
  }
}

</mosaic_0001>

<llo_original>
// kernel: tpu_custom_call.1
$region0: #{tpu_custom_call.1}
  #allocation0 [shape = 'u32[]', space=smem, size = 0x4, offset = 0x4, fixed_abs, tag = 'smem constant byte address 0x4 - core index']
  #allocation1 [shape = 'u32[144,128]{1,0:T(1,128)}', space=vmem, size = 0x12000, scoped, tag = 'internal scratch']
  %s0 = inlined_call_operand.hbm [shape: f32[1,3], index: 0, kind: input, shape index: {}]
  %s1 = inlined_call_operand.hbm [shape: f32[8,128], index: 1, kind: input, shape index: {}]
  %s2 = inlined_call_operand.hbm [shape: f32[1,1], index: 2, kind: output, shape index: {}]
  %s3 = sld [smem:[#allocation0]]
  $region30: #{tpu_custom_call.1} parent=0
    _
  %s5 = ssub.s32 1, %s3
  %s6 = scalar_select 0, %s5, %s3
  $region1: #{tpu_custom_call.1} parent=0
    #allocation2 [shape = 'u8[512]{0}', space=smem, size = 0x200, scoped, tag = 'input window, operand 0, single buffered']
    #allocation3 [shape = 's32[1]{0}', space=sflag, size = 0x4, scoped, tag = 'scoped memory for tpu_custom_call.1']
    #allocation4 [shape = 's32[1]{0}', space=sflag, size = 0x4, scoped, tag = 'scoped memory for tpu_custom_call.1']
    #allocation5 [shape = 's32[1]{0}', space=sflag, size = 0x4, scoped, tag = 'scoped memory for tpu_custom_call.1']
    #allocation6 [shape = 'u8[4096]{0}', space=vmem, size = 0x1000, scoped, tag = 'input window, operand 1, single buffered']
    #allocation7 [shape = 'u8[512]{0}', space=smem, size = 0x200, scoped, tag = 'output window, operand 0, single buffered']
    %7 = vsyncpa [#allocation4], 0
    %8 = vsyncpa [#allocation3], 0
    %9 = vsyncpa [#allocation5], 0
    // Predicated region
    $region2: #{tpu_custom_call.1} parent=1 // pred_check
      _
    $region3: #{tpu_custom_call.1} parent=1 // pred_check_branch
      %11 = sbr.rel (0) target = $region5
    $region4: #{tpu_custom_call.1} parent=1 // pred_region
      %s13 = ssub.s32 16, 16
      %14 = vsyncadd [#allocation4], %s13
      %17 = dma.hbm_to_smem %s0, 16, [#allocation2], [#allocation4]
    $region5: #{tpu_custom_call.1} parent=1 // pred_fallthru
      _
    // Predicated region
    $region6: #{tpu_custom_call.1} parent=1 // pred_check
      _
    $region7: #{tpu_custom_call.1} parent=1 // pred_check_branch
      %19 = sbr.rel (0) target = $region9
    $region8: #{tpu_custom_call.1} parent=1 // pred_region
      %s21 = ssub.s32 128, 128
      %22 = vsyncadd [#allocation3], %s21
      %s24 = sshll.u32 [#allocation6], 4
      %s25 = int_to_ptr.vmem [resolvable:$true] %s24
      %27 = dma.hbm_to_vmem [thread:$0]  %s1, 128, %s25, [#allocation3]
    $region9: #{tpu_custom_call.1} parent=1 // pred_fallthru
      _
    // Predicated region
    $region10: #{tpu_custom_call.1} parent=1 // pred_check
      _
    $region11: #{tpu_custom_call.1} parent=1 // pred_check_branch
      %29 = sbr.rel (0) target = $region13
    $region12: #{tpu_custom_call.1} parent=1 // pred_region
      %30 = dma.done [#allocation4], 16
    $region13: #{tpu_custom_call.1} parent=1 // pred_fallthru
      _
    // Predicated region
    $region14: #{tpu_custom_call.1} parent=1 // pred_check
      _
    $region15: #{tpu_custom_call.1} parent=1 // pred_check_branch
      %32 = sbr.rel (0) target = $region17
    $region16: #{tpu_custom_call.1} parent=1 // pred_region
      %33 = dma.done [#allocation3], 128
    $region17: #{tpu_custom_call.1} parent=1 // pred_fallthru
      _
    %34 = sfence
    %p35 = scmp.eq.s32.totalorder 0, 0
    // Predicated region
    $region18: #{tpu_custom_call.1} parent=1 // pred_check
      %p36 = pneg %p35
    $region19: #{tpu_custom_call.1} parent=1 // pred_check_branch
      %38 = sbr.rel (%p36) target = $region21
    $region20: #{tpu_custom_call.1} parent=1 // pred_region
      %s39 = scalar_lea.smem [#allocation7], 0
      %40 = sst [smem:[%s39]] 0.0
    $region21: #{tpu_custom_call.1} parent=1 // pred_fallthru
      _
    %v41 = vld [vmem:[#allocation6] sm:$0xff]
    %s42 = smul.u32 0, 1024
    %v43 = vlaneseq
    %v44 = vshrl.u32 %v43, 7
    %v45 = vmul.u32 %v44, 128
    %v46 = vstv %s42
    %v47 = vadd.s32 %v46, %v45
    %v48 = vlaneseq
    %v49 = vand.u32 %v48, 127
    %v50 = vadd.s32 %v47, %v49
    %v51 = vshra.s32 %v50, 3
    %v52 = vand.u32 %v50, 7
    %vm53 = vcmp.ge.s32.totalorder %v51, 8
    %v54 = vsel %vm53, 1, 0
    %vm55 = vcmp.ge.s32.totalorder %v51, 16
    %v56 = vsel %vm55, 1, 0
    %v57 = vadd.s32 %v54, %v56
    %v58 = vmul.u32 %v57, 8
    %v59 = vsub.s32 %v51, %v58
    %vm60 = vcmp.ge.s32.totalorder %v59, 2
    %vm61 = vcmp.lt.s32.totalorder %v59, 6
    %vm62 = vmand %vm60, %vm61
    %vm63 = vcmp.lt.s32.totalorder %v51, 24
    %vm64 = vmand %vm62, %vm63
    %vm65 = vcmp.lt.s32.totalorder %v52, 7
    %vm66 = vmand %vm64, %vm65
    %s67 = sld [smem:[#allocation2]]
    %s68 = sld [smem:[#allocation2 + $0x1]]
    %s69 = sld [smem:[#allocation2 + $0x2]]
    %vm70 = vcmp.eq.s32.totalorder %v57, 0
    %vm71 = vcmp.eq.s32.totalorder %v57, 1
    %v72 = vstv %s68
    %v73 = vstv %s69
    %v74 = vsel %vm71, %v72, %v73
    %v75 = vstv %s67
    %v76 = vsel %vm70, %v75, %v74
    %v77 = vsel %vm66, %v76, 0.0
    %v78 = vsel %vm66, %v41, 0.0
    %s79 = sld [smem:[#allocation7]]
    %v80 = vand.u32 2147483647, %v78
    %v81 = vmul.f32 %v77, %v80
    %82 = vadd.xlane.f32.xlu0 %v81
    %v83 = vpop.xlane.xlu0 %82
    %v84 = vrot.slane %v83, 4
    %v85 = vadd.f32 %v83, %v84
    %v86 = vrot.slane %v85, 2
    %v87 = vadd.f32 %v85, %v86
    %v88 = vrot.slane %v87, 1
    %v89 = vadd.f32 %v87, %v88
    %s90 = vtos %v89
    %s91 = sadd.f32 %s79, %s90
    %s92 = scalar_lea.smem [#allocation7], 0
    %93 = sst [smem:[%s92]] %s91
    // Predicated region
    $region22: #{tpu_custom_call.1} parent=1 // pred_check
      _
    $region23: #{tpu_custom_call.1} parent=1 // pred_check_branch
      %95 = sbr.rel (0) target = $region25
    $region24: #{tpu_custom_call.1} parent=1 // pred_region
      %s97 = ssub.s32 16, 16
      %98 = vsyncadd [#allocation5], %s97
      %101 = dma.smem_to_hbm [#allocation7], 16, %s2, [#allocation5]
    $region25: #{tpu_custom_call.1} parent=1 // pred_fallthru
      _
    // Predicated region
    $region26: #{tpu_custom_call.1} parent=1 // pred_check
      _
    $region27: #{tpu_custom_call.1} parent=1 // pred_check_branch
      %103 = sbr.rel (0) target = $region29
    $region28: #{tpu_custom_call.1} parent=1 // pred_region
      %104 = dma.done [#allocation5], 16
    $region29: #{tpu_custom_call.1} parent=1 // pred_fallthru
      _
    %105 = sfence
    %106 = vsyncpa [#allocation3], 1
    %107 = vsyncpa [#allocation4], 1
    %108 = vsyncpa [#allocation5], 1

</llo_original>
